<compile_context>
chip_gen: v7x
topology: tpu7x:2x2x1
jax: 0.10.0
libtpu: 0.0.40
codegen_flags: <defaults>
</compile_context>

<pallas_src>
from functools import partial

import jax
import jax.numpy as jnp
from jax.experimental import pallas as pl
from jax.experimental.pallas import tpu as pltpu


def _align8(n):
    return ((n + 7) // 8) * 8


def pack_params(weight_ih, weight_hh, bias_ih, bias_hh, logits_w, logits_b):
    """Pack all constant parameters into ONE lane-dense f32 slab (done once).

    PyTorch layouts in:  weight_ih (4H, I), weight_hh (4H, H), bias_* (4H,),
                         logits_w (O, H), logits_b (O,)
    Slab rows (each segment sublane-aligned to a multiple of 8):
        [R_WIH : R_WIH+I ]  W_ih^T   (I , 4H)   gates fused [i,f,g,o] on lanes
        [R_WHH : R_WHH+H ]  W_hh^T   (H , 4H)
        [R_B             ]  b_ih+b_hh (1, 4H)
        [R_WOUT: R_WOUT+H]  W_out^T  (H , O_pad)  O padded to full lane width
        [R_BOUT          ]  b_out    (1 , O_pad)  padded cols carry -1e30
    """
    fourH, I = weight_ih.shape
    H = fourH // 4
    O = logits_w.shape[0]
    assert fourH == 4 * H and fourH % 128 == 0, "fused gates must fill lanes"
    LANES = fourH
    assert O <= LANES, "logits width must fit the slab lane width"

    R_WIH = 0
    R_WHH = _align8(R_WIH + I)
    R_B = _align8(R_WHH + H)
    R_WOUT = _align8(R_B + 1)
    R_BOUT = _align8(R_WOUT + H)
    ROWS = _align8(R_BOUT + 1)

    slab = jnp.zeros((ROWS, LANES), jnp.float32)
    slab = slab.at[R_WIH:R_WIH + I, :].set(weight_ih.T)
    slab = slab.at[R_WHH:R_WHH + H, :].set(weight_hh.T)
    slab = slab.at[R_B, :].set(bias_ih + bias_hh)
    slab = slab.at[R_WOUT:R_WOUT + H, :O].set(logits_w.T)
    # Padded logit columns: -1e30 bias -> exp() underflows to exactly 0 in f32,
    # so they never contribute to the log_softmax denominator.
    slab = slab.at[R_BOUT, :].set(-1e30)
    slab = slab.at[R_BOUT, :O].set(logits_b)

    meta = (H, O, LANES, R_WIH, R_WHH, R_B, R_WOUT, R_BOUT)
    return slab, meta


def _make_kernel(T, B, I, H, offs):
    """Whole forward pass in one grid-less invocation (everything in VMEM)."""
    R_WIH, R_WHH, R_B, R_WOUT, R_BOUT = offs

    def kernel(x_ref, state_ref, p_ref, out_ref):
        # x_ref    : (T*B, I)     time-major, batch padded to sublane multiple
        # state_ref: (2*B, H)     rows [0:B] = h0, rows [B:2B] = c0
        # p_ref    : (ROWS, 128)  packed parameter slab (static row slices)
        # out_ref  : (B, O_pad)   log-probs, lane-dense unmasked store
        wih = p_ref[R_WIH:R_WIH + I, :]                     # (I, 4H)
        whh = p_ref[R_WHH:R_WHH + H, :]                     # (H, 4H)
        b = p_ref[R_B:R_B + 1, :]                           # (1, 4H)

        # Hoisted input projection: one lane-dense (T*B, I) @ (I, 4H) GEMM,
        # gate bias folded in once (not per step / per gate).
        xw = jnp.dot(x_ref[...], wih,
                     preferred_element_type=jnp.float32) + b          # (T*B,4H)

        h = state_ref[0:B, :]                                          # (B, H)
        c = state_ref[B:2 * B, :]                                      # (B, H)

        # Fully unrolled recurrence: only h @ W_hh is on the serial chain.
        for t in range(T):                                             # static
            pre = xw[t * B:(t + 1) * B, :] + jnp.dot(
                h, whh, preferred_element_type=jnp.float32)            # (B, 4H)
            # Two full-vreg EUP passes instead of four quarter-width ones.
            sig = jax.nn.sigmoid(pre)
            th = jnp.tanh(pre)
            i_g = sig[:, 0 * H:1 * H]
            f_g = sig[:, 1 * H:2 * H]
            g_g = th[:, 2 * H:3 * H]
            o_g = sig[:, 3 * H:4 * H]
            c = f_g * c + i_g * g_g
            h = o_g * jnp.tanh(c)

        # Final linear + log_softmax (fused, lane-dense unmasked store).
        wout = p_ref[R_WOUT:R_WOUT + H, :]                  # (H, O_pad)
        bout = p_ref[R_BOUT:R_BOUT + 1, :]                  # (1, O_pad)
        scores = jnp.dot(h, wout,
                         preferred_element_type=jnp.float32) + bout    # (B,O_pad)
        m = jnp.max(scores, axis=-1, keepdims=True)
        s = scores - m
        lse = jnp.log(jnp.sum(jnp.exp(s), axis=-1, keepdims=True))
        out_ref[...] = (s - lse).astype(out_ref.dtype)

    return kernel


@partial(jax.jit, static_argnums=(4,))
def rnn_forward(x, h0, c0, param_slab, meta):
    """x: (T, B, I); h0/c0: (B, H); param_slab/meta from pack_params.

    Returns log-probs (B, O). Everything (pads, reshape, kernel, slice) is
    fused under this single jit so only the per-call tensors touch the
    per-call path — constant parameter padding happened once at pack time.
    """
    T, B, I = x.shape
    H, O, LANES, R_WIH, R_WHH, R_B, R_WOUT, R_BOUT = meta

    B_pad = _align8(B)          # sublane multiple -> whole-vreg xw slices

    x_p = jnp.zeros((T, B_pad, I), jnp.float32).at[:, :B, :].set(x)
    x2d = x_p.reshape(T * B_pad, I)            # row t*B_pad + b (time-major)

    state = jnp.zeros((2 * B_pad, H), jnp.float32)
    state = state.at[:B, :].set(h0).at[B_pad:B_pad + B, :].set(c0)

    kernel = _make_kernel(T, B_pad, I, H,
                          (R_WIH, R_WHH, R_B, R_WOUT, R_BOUT))
    vmem = pl.BlockSpec(memory_space=pltpu.MemorySpace.VMEM)
    out = pl.pallas_call(
        kernel,
        out_shape=jax.ShapeDtypeStruct((B_pad, LANES), jnp.float32),
        in_specs=[vmem, vmem, vmem],
        out_specs=vmem,
    )(x2d, state, param_slab)

    return out[:B, :O]


def rnn_reference(x, h0, c0, weight_ih, weight_hh, bias_ih, bias_hh,
                  logits_w, logits_b):
    """Pure-JAX reference of the same forward pass (for validation)."""
    H = h0.shape[-1]
    w_ih = weight_ih.T
    w_hh = weight_hh.T
    b = (bias_ih + bias_hh)[None, :]

    def step(carry, x_t):
        h, c = carry
        pre = x_t @ w_ih + h @ w_hh + b
        i = jax.nn.sigmoid(pre[:, 0 * H:1 * H])
        f = jax.nn.sigmoid(pre[:, 1 * H:2 * H])
        g = jnp.tanh(pre[:, 2 * H:3 * H])
        o = jax.nn.sigmoid(pre[:, 3 * H:4 * H])
        c = f * c + i * g
        h = o * jnp.tanh(c)
        return (h, c), None

    (h, _), _ = jax.lax.scan(step, (h0, c0), x)
    scores = h @ logits_w.T + logits_b[None, :]
    return jax.nn.log_softmax(scores, axis=-1)


if __name__ == "__main__":
    # Shapes consistent with the module's forward:
    # input (seq_len=8, batch=4, input_size=16), hidden=32, output=16.
    T, B, I, H, O = 8, 4, 16, 32, 16

    key = jax.random.PRNGKey(0)
    kx, kh, kc, k1, k2, k3, k4, k5, k6 = jax.random.split(key, 9)

    x = jax.random.normal(kx, (T, B, I), dtype=jnp.float32)
    # The PyTorch module draws h0/c0 ~ randn each call; here they are drawn
    # deterministically from the fixed PRNG key.
    h0 = jax.random.normal(kh, (B, H), dtype=jnp.float32)
    c0 = jax.random.normal(kc, (B, H), dtype=jnp.float32)

    # Deterministic parameter init, mimicking PyTorch's U(-1/sqrt(H), 1/sqrt(H)),
    # in PyTorch's native layouts / gate order [i, f, g, o].
    bound = 1.0 / jnp.sqrt(jnp.float32(H))
    weight_ih = jax.random.uniform(k1, (4 * H, I), jnp.float32, -bound, bound)
    weight_hh = jax.random.uniform(k2, (4 * H, H), jnp.float32, -bound, bound)
    bias_ih = jax.random.uniform(k3, (4 * H,), jnp.float32, -bound, bound)
    bias_hh = jax.random.uniform(k4, (4 * H,), jnp.float32, -bound, bound)
    logits_w = jax.random.uniform(k5, (O, H), jnp.float32, -bound, bound)
    logits_b = jax.random.uniform(k6, (O,), jnp.float32, -bound, bound)

    # One-time packing of all constant parameters (off the per-call path).
    param_slab, meta = pack_params(weight_ih, weight_hh, bias_ih, bias_hh,
                                   logits_w, logits_b)
    param_slab = jax.block_until_ready(param_slab)

    out = rnn_forward(x, h0, c0, param_slab, meta)
    out = jax.block_until_ready(out)

    ref = rnn_reference(x, h0, c0, weight_ih, weight_hh, bias_ih, bias_hh,
                        logits_w, logits_b)
    assert out.shape == (B, O)
    assert jnp.allclose(out, ref, atol=1e-4, rtol=1e-4), "mismatch vs reference"

    print("KERNEL_OK")
</pallas_src>

<mosaic_0001>
module attributes {stable_mosaic.version = 11 : i64} {
  func.func @kernel(%arg0: memref<64x16xf32, #tpu.memory_space<vmem>>, %arg1: memref<16x32xf32, #tpu.memory_space<vmem>>, %arg2: memref<96x128xf32, #tpu.memory_space<vmem>>, %arg3: memref<8x128xf32, #tpu.memory_space<vmem>>) attributes {dimension_semantics = [], scalar_prefetch = 0 : i64, scratch_operands = 0 : i64, tpu.core_type = #tpu.core_type<tc>} {
    %c0 = arith.constant 0 : index
    %c0_0 = arith.constant 0 : index
    %0 = vector.load %arg2[%c0, %c0_0] : memref<96x128xf32, #tpu.memory_space<vmem>>, vector<16x128xf32>
    %c16 = arith.constant 16 : index
    %c0_1 = arith.constant 0 : index
    %1 = vector.load %arg2[%c16, %c0_1] : memref<96x128xf32, #tpu.memory_space<vmem>>, vector<32x128xf32>
    %c48 = arith.constant 48 : index
    %c0_2 = arith.constant 0 : index
    %2 = vector.load %arg2[%c48, %c0_2] : memref<96x128xf32, #tpu.memory_space<vmem>>, vector<1x128xf32>
    %c0_3 = arith.constant 0 : index
    %c0_4 = arith.constant 0 : index
    %3 = vector.load %arg0[%c0_3, %c0_4] : memref<64x16xf32, #tpu.memory_space<vmem>>, vector<64x16xf32>
    %cst = arith.constant dense<0.000000e+00> : vector<64x128xf32>
    %4 = tpu.matmul %3, %0, %cst {dimension_numbers = #tpu.dot_dimension_numbers<[1], [0], [0], [1], [0, 0, 1, 1], [], []>} : vector<64x16xf32>, vector<16x128xf32>, vector<64x128xf32> -> vector<64x128xf32>
    %5 = vector.broadcast %2 : vector<1x128xf32> to vector<64x128xf32>
    %6 = arith.addf %4, %5 : vector<64x128xf32>
    %c0_5 = arith.constant 0 : index
    %c0_6 = arith.constant 0 : index
    %7 = vector.load %arg1[%c0_5, %c0_6] : memref<16x32xf32, #tpu.memory_space<vmem>>, vector<8x32xf32>
    %c8 = arith.constant 8 : index
    %c0_7 = arith.constant 0 : index
    %8 = vector.load %arg1[%c8, %c0_7] : memref<16x32xf32, #tpu.memory_space<vmem>>, vector<8x32xf32>
    %9 = vector.extract_strided_slice %6 {offsets = [0, 0], sizes = [8, 128], strides = [1, 1]} : vector<64x128xf32> to vector<8x128xf32>
    %cst_8 = arith.constant dense<0.000000e+00> : vector<8x128xf32>
    %10 = tpu.matmul %7, %1, %cst_8 {dimension_numbers = #tpu.dot_dimension_numbers<[1], [0], [0], [1], [0, 0, 1, 1], [], []>} : vector<8x32xf32>, vector<32x128xf32>, vector<8x128xf32> -> vector<8x128xf32>
    %11 = arith.addf %9, %10 : vector<8x128xf32>
    %12 = arith.negf %11 : vector<8x128xf32>
    %13 = math.exp %12 : vector<8x128xf32>
    %cst_9 = arith.constant 1.000000e+00 : f32
    %14 = vector.broadcast %cst_9 : f32 to vector<8x128xf32>
    %15 = arith.addf %14, %13 : vector<8x128xf32>
    %16 = arith.divf %14, %15 : vector<8x128xf32>
    %17 = math.tanh %11 : vector<8x128xf32>
    %18 = vector.extract_strided_slice %16 {offsets = [0, 0], sizes = [8, 32], strides = [1, 1]} : vector<8x128xf32> to vector<8x32xf32>
    %19 = vector.extract_strided_slice %16 {offsets = [0, 32], sizes = [8, 32], strides = [1, 1]} : vector<8x128xf32> to vector<8x32xf32>
    %20 = vector.extract_strided_slice %17 {offsets = [0, 64], sizes = [8, 32], strides = [1, 1]} : vector<8x128xf32> to vector<8x32xf32>
    %21 = vector.extract_strided_slice %16 {offsets = [0, 96], sizes = [8, 32], strides = [1, 1]} : vector<8x128xf32> to vector<8x32xf32>
    %22 = arith.mulf %19, %8 : vector<8x32xf32>
    %23 = arith.mulf %18, %20 : vector<8x32xf32>
    %24 = arith.addf %22, %23 : vector<8x32xf32>
    %25 = math.tanh %24 : vector<8x32xf32>
    %26 = arith.mulf %21, %25 : vector<8x32xf32>
    %27 = vector.extract_strided_slice %6 {offsets = [8, 0], sizes = [8, 128], strides = [1, 1]} : vector<64x128xf32> to vector<8x128xf32>
    %cst_10 = arith.constant dense<0.000000e+00> : vector<8x128xf32>
    %28 = tpu.matmul %26, %1, %cst_10 {dimension_numbers = #tpu.dot_dimension_numbers<[1], [0], [0], [1], [0, 0, 1, 1], [], []>} : vector<8x32xf32>, vector<32x128xf32>, vector<8x128xf32> -> vector<8x128xf32>
    %29 = arith.addf %27, %28 : vector<8x128xf32>
    %30 = arith.negf %29 : vector<8x128xf32>
    %31 = math.exp %30 : vector<8x128xf32>
    %cst_11 = arith.constant 1.000000e+00 : f32
    %32 = vector.broadcast %cst_11 : f32 to vector<8x128xf32>
    %33 = arith.addf %32, %31 : vector<8x128xf32>
    %34 = arith.divf %32, %33 : vector<8x128xf32>
    %35 = math.tanh %29 : vector<8x128xf32>
    %36 = vector.extract_strided_slice %34 {offsets = [0, 0], sizes = [8, 32], strides = [1, 1]} : vector<8x128xf32> to vector<8x32xf32>
    %37 = vector.extract_strided_slice %34 {offsets = [0, 32], sizes = [8, 32], strides = [1, 1]} : vector<8x128xf32> to vector<8x32xf32>
    %38 = vector.extract_strided_slice %35 {offsets = [0, 64], sizes = [8, 32], strides = [1, 1]} : vector<8x128xf32> to vector<8x32xf32>
    %39 = vector.extract_strided_slice %34 {offsets = [0, 96], sizes = [8, 32], strides = [1, 1]} : vector<8x128xf32> to vector<8x32xf32>
    %40 = arith.mulf %37, %24 : vector<8x32xf32>
    %41 = arith.mulf %36, %38 : vector<8x32xf32>
    %42 = arith.addf %40, %41 : vector<8x32xf32>
    %43 = math.tanh %42 : vector<8x32xf32>
    %44 = arith.mulf %39, %43 : vector<8x32xf32>
    %45 = vector.extract_strided_slice %6 {offsets = [16, 0], sizes = [8, 128], strides = [1, 1]} : vector<64x128xf32> to vector<8x128xf32>
    %cst_12 = arith.constant dense<0.000000e+00> : vector<8x128xf32>
    %46 = tpu.matmul %44, %1, %cst_12 {dimension_numbers = #tpu.dot_dimension_numbers<[1], [0], [0], [1], [0, 0, 1, 1], [], []>} : vector<8x32xf32>, vector<32x128xf32>, vector<8x128xf32> -> vector<8x128xf32>
    %47 = arith.addf %45, %46 : vector<8x128xf32>
    %48 = arith.negf %47 : vector<8x128xf32>
    %49 = math.exp %48 : vector<8x128xf32>
    %cst_13 = arith.constant 1.000000e+00 : f32
    %50 = vector.broadcast %cst_13 : f32 to vector<8x128xf32>
    %51 = arith.addf %50, %49 : vector<8x128xf32>
    %52 = arith.divf %50, %51 : vector<8x128xf32>
    %53 = math.tanh %47 : vector<8x128xf32>
    %54 = vector.extract_strided_slice %52 {offsets = [0, 0], sizes = [8, 32], strides = [1, 1]} : vector<8x128xf32> to vector<8x32xf32>
    %55 = vector.extract_strided_slice %52 {offsets = [0, 32], sizes = [8, 32], strides = [1, 1]} : vector<8x128xf32> to vector<8x32xf32>
    %56 = vector.extract_strided_slice %53 {offsets = [0, 64], sizes = [8, 32], strides = [1, 1]} : vector<8x128xf32> to vector<8x32xf32>
    %57 = vector.extract_strided_slice %52 {offsets = [0, 96], sizes = [8, 32], strides = [1, 1]} : vector<8x128xf32> to vector<8x32xf32>
    %58 = arith.mulf %55, %42 : vector<8x32xf32>
    %59 = arith.mulf %54, %56 : vector<8x32xf32>
    %60 = arith.addf %58, %59 : vector<8x32xf32>
    %61 = math.tanh %60 : vector<8x32xf32>
    %62 = arith.mulf %57, %61 : vector<8x32xf32>
    %63 = vector.extract_strided_slice %6 {offsets = [24, 0], sizes = [8, 128], strides = [1, 1]} : vector<64x128xf32> to vector<8x128xf32>
    %cst_14 = arith.constant dense<0.000000e+00> : vector<8x128xf32>
    %64 = tpu.matmul %62, %1, %cst_14 {dimension_numbers = #tpu.dot_dimension_numbers<[1], [0], [0], [1], [0, 0, 1, 1], [], []>} : vector<8x32xf32>, vector<32x128xf32>, vector<8x128xf32> -> vector<8x128xf32>
    %65 = arith.addf %63, %64 : vector<8x128xf32>
    %66 = arith.negf %65 : vector<8x128xf32>
    %67 = math.exp %66 : vector<8x128xf32>
    %cst_15 = arith.constant 1.000000e+00 : f32
    %68 = vector.broadcast %cst_15 : f32 to vector<8x128xf32>
    %69 = arith.addf %68, %67 : vector<8x128xf32>
    %70 = arith.divf %68, %69 : vector<8x128xf32>
    %71 = math.tanh %65 : vector<8x128xf32>
    %72 = vector.extract_strided_slice %70 {offsets = [0, 0], sizes = [8, 32], strides = [1, 1]} : vector<8x128xf32> to vector<8x32xf32>
    %73 = vector.extract_strided_slice %70 {offsets = [0, 32], sizes = [8, 32], strides = [1, 1]} : vector<8x128xf32> to vector<8x32xf32>
    %74 = vector.extract_strided_slice %71 {offsets = [0, 64], sizes = [8, 32], strides = [1, 1]} : vector<8x128xf32> to vector<8x32xf32>
    %75 = vector.extract_strided_slice %70 {offsets = [0, 96], sizes = [8, 32], strides = [1, 1]} : vector<8x128xf32> to vector<8x32xf32>
    %76 = arith.mulf %73, %60 : vector<8x32xf32>
    %77 = arith.mulf %72, %74 : vector<8x32xf32>
    %78 = arith.addf %76, %77 : vector<8x32xf32>
    %79 = math.tanh %78 : vector<8x32xf32>
    %80 = arith.mulf %75, %79 : vector<8x32xf32>
    %81 = vector.extract_strided_slice %6 {offsets = [32, 0], sizes = [8, 128], strides = [1, 1]} : vector<64x128xf32> to vector<8x128xf32>
    %cst_16 = arith.constant dense<0.000000e+00> : vector<8x128xf32>
    %82 = tpu.matmul %80, %1, %cst_16 {dimension_numbers = #tpu.dot_dimension_numbers<[1], [0], [0], [1], [0, 0, 1, 1], [], []>} : vector<8x32xf32>, vector<32x128xf32>, vector<8x128xf32> -> vector<8x128xf32>
    %83 = arith.addf %81, %82 : vector<8x128xf32>
    %84 = arith.negf %83 : vector<8x128xf32>
    %85 = math.exp %84 : vector<8x128xf32>
    %cst_17 = arith.constant 1.000000e+00 : f32
    %86 = vector.broadcast %cst_17 : f32 to vector<8x128xf32>
    %87 = arith.addf %86, %85 : vector<8x128xf32>
    %88 = arith.divf %86, %87 : vector<8x128xf32>
    %89 = math.tanh %83 : vector<8x128xf32>
    %90 = vector.extract_strided_slice %88 {offsets = [0, 0], sizes = [8, 32], strides = [1, 1]} : vector<8x128xf32> to vector<8x32xf32>
    %91 = vector.extract_strided_slice %88 {offsets = [0, 32], sizes = [8, 32], strides = [1, 1]} : vector<8x128xf32> to vector<8x32xf32>
    %92 = vector.extract_strided_slice %89 {offsets = [0, 64], sizes = [8, 32], strides = [1, 1]} : vector<8x128xf32> to vector<8x32xf32>
    %93 = vector.extract_strided_slice %88 {offsets = [0, 96], sizes = [8, 32], strides = [1, 1]} : vector<8x128xf32> to vector<8x32xf32>
    %94 = arith.mulf %91, %78 : vector<8x32xf32>
    %95 = arith.mulf %90, %92 : vector<8x32xf32>
    %96 = arith.addf %94, %95 : vector<8x32xf32>
    %97 = math.tanh %96 : vector<8x32xf32>
    %98 = arith.mulf %93, %97 : vector<8x32xf32>
    %99 = vector.extract_strided_slice %6 {offsets = [40, 0], sizes = [8, 128], strides = [1, 1]} : vector<64x128xf32> to vector<8x128xf32>
    %cst_18 = arith.constant dense<0.000000e+00> : vector<8x128xf32>
    %100 = tpu.matmul %98, %1, %cst_18 {dimension_numbers = #tpu.dot_dimension_numbers<[1], [0], [0], [1], [0, 0, 1, 1], [], []>} : vector<8x32xf32>, vector<32x128xf32>, vector<8x128xf32> -> vector<8x128xf32>
    %101 = arith.addf %99, %100 : vector<8x128xf32>
    %102 = arith.negf %101 : vector<8x128xf32>
    %103 = math.exp %102 : vector<8x128xf32>
    %cst_19 = arith.constant 1.000000e+00 : f32
    %104 = vector.broadcast %cst_19 : f32 to vector<8x128xf32>
    %105 = arith.addf %104, %103 : vector<8x128xf32>
    %106 = arith.divf %104, %105 : vector<8x128xf32>
    %107 = math.tanh %101 : vector<8x128xf32>
    %108 = vector.extract_strided_slice %106 {offsets = [0, 0], sizes = [8, 32], strides = [1, 1]} : vector<8x128xf32> to vector<8x32xf32>
    %109 = vector.extract_strided_slice %106 {offsets = [0, 32], sizes = [8, 32], strides = [1, 1]} : vector<8x128xf32> to vector<8x32xf32>
    %110 = vector.extract_strided_slice %107 {offsets = [0, 64], sizes = [8, 32], strides = [1, 1]} : vector<8x128xf32> to vector<8x32xf32>
    %111 = vector.extract_strided_slice %106 {offsets = [0, 96], sizes = [8, 32], strides = [1, 1]} : vector<8x128xf32> to vector<8x32xf32>
    %112 = arith.mulf %109, %96 : vector<8x32xf32>
    %113 = arith.mulf %108, %110 : vector<8x32xf32>
    %114 = arith.addf %112, %113 : vector<8x32xf32>
    %115 = math.tanh %114 : vector<8x32xf32>
    %116 = arith.mulf %111, %115 : vector<8x32xf32>
    %117 = vector.extract_strided_slice %6 {offsets = [48, 0], sizes = [8, 128], strides = [1, 1]} : vector<64x128xf32> to vector<8x128xf32>
    %cst_20 = arith.constant dense<0.000000e+00> : vector<8x128xf32>
    %118 = tpu.matmul %116, %1, %cst_20 {dimension_numbers = #tpu.dot_dimension_numbers<[1], [0], [0], [1], [0, 0, 1, 1], [], []>} : vector<8x32xf32>, vector<32x128xf32>, vector<8x128xf32> -> vector<8x128xf32>
    %119 = arith.addf %117, %118 : vector<8x128xf32>
    %120 = arith.negf %119 : vector<8x128xf32>
    %121 = math.exp %120 : vector<8x128xf32>
    %cst_21 = arith.constant 1.000000e+00 : f32
    %122 = vector.broadcast %cst_21 : f32 to vector<8x128xf32>
    %123 = arith.addf %122, %121 : vector<8x128xf32>
    %124 = arith.divf %122, %123 : vector<8x128xf32>
    %125 = math.tanh %119 : vector<8x128xf32>
    %126 = vector.extract_strided_slice %124 {offsets = [0, 0], sizes = [8, 32], strides = [1, 1]} : vector<8x128xf32> to vector<8x32xf32>
    %127 = vector.extract_strided_slice %124 {offsets = [0, 32], sizes = [8, 32], strides = [1, 1]} : vector<8x128xf32> to vector<8x32xf32>
    %128 = vector.extract_strided_slice %125 {offsets = [0, 64], sizes = [8, 32], strides = [1, 1]} : vector<8x128xf32> to vector<8x32xf32>
    %129 = vector.extract_strided_slice %124 {offsets = [0, 96], sizes = [8, 32], strides = [1, 1]} : vector<8x128xf32> to vector<8x32xf32>
    %130 = arith.mulf %127, %114 : vector<8x32xf32>
    %131 = arith.mulf %126, %128 : vector<8x32xf32>
    %132 = arith.addf %130, %131 : vector<8x32xf32>
    %133 = math.tanh %132 : vector<8x32xf32>
    %134 = arith.mulf %129, %133 : vector<8x32xf32>
    %135 = vector.extract_strided_slice %6 {offsets = [56, 0], sizes = [8, 128], strides = [1, 1]} : vector<64x128xf32> to vector<8x128xf32>
    %cst_22 = arith.constant dense<0.000000e+00> : vector<8x128xf32>
    %136 = tpu.matmul %134, %1, %cst_22 {dimension_numbers = #tpu.dot_dimension_numbers<[1], [0], [0], [1], [0, 0, 1, 1], [], []>} : vector<8x32xf32>, vector<32x128xf32>, vector<8x128xf32> -> vector<8x128xf32>
    %137 = arith.addf %135, %136 : vector<8x128xf32>
    %138 = arith.negf %137 : vector<8x128xf32>
    %139 = math.exp %138 : vector<8x128xf32>
    %cst_23 = arith.constant 1.000000e+00 : f32
    %140 = vector.broadcast %cst_23 : f32 to vector<8x128xf32>
    %141 = arith.addf %140, %139 : vector<8x128xf32>
    %142 = arith.divf %140, %141 : vector<8x128xf32>
    %143 = math.tanh %137 : vector<8x128xf32>
    %144 = vector.extract_strided_slice %142 {offsets = [0, 0], sizes = [8, 32], strides = [1, 1]} : vector<8x128xf32> to vector<8x32xf32>
    %145 = vector.extract_strided_slice %142 {offsets = [0, 32], sizes = [8, 32], strides = [1, 1]} : vector<8x128xf32> to vector<8x32xf32>
    %146 = vector.extract_strided_slice %143 {offsets = [0, 64], sizes = [8, 32], strides = [1, 1]} : vector<8x128xf32> to vector<8x32xf32>
    %147 = vector.extract_strided_slice %142 {offsets = [0, 96], sizes = [8, 32], strides = [1, 1]} : vector<8x128xf32> to vector<8x32xf32>
    %148 = arith.mulf %145, %132 : vector<8x32xf32>
    %149 = arith.mulf %144, %146 : vector<8x32xf32>
    %150 = arith.addf %148, %149 : vector<8x32xf32>
    %151 = math.tanh %150 : vector<8x32xf32>
    %152 = arith.mulf %147, %151 : vector<8x32xf32>
    %c56 = arith.constant 56 : index
    %c0_24 = arith.constant 0 : index
    %153 = vector.load %arg2[%c56, %c0_24] : memref<96x128xf32, #tpu.memory_space<vmem>>, vector<32x128xf32>
    %c88 = arith.constant 88 : index
    %c0_25 = arith.constant 0 : index
    %154 = vector.load %arg2[%c88, %c0_25] : memref<96x128xf32, #tpu.memory_space<vmem>>, vector<1x128xf32>
    %cst_26 = arith.constant dense<0.000000e+00> : vector<8x128xf32>
    %155 = tpu.matmul %152, %153, %cst_26 {dimension_numbers = #tpu.dot_dimension_numbers<[1], [0], [0], [1], [0, 0, 1, 1], [], []>} : vector<8x32xf32>, vector<32x128xf32>, vector<8x128xf32> -> vector<8x128xf32>
    %156 = vector.broadcast %154 : vector<1x128xf32> to vector<8x128xf32>
    %157 = arith.addf %155, %156 : vector<8x128xf32>
    %cst_27 = arith.constant dense<0xFF800000> : vector<8xf32>
    %158 = vector.multi_reduction <maximumf>, %157, %cst_27 [1] : vector<8x128xf32> to vector<8xf32>
    %159 = vector.shape_cast %158 : vector<8xf32> to vector<8x1xf32>
    %160 = vector.broadcast %159 : vector<8x1xf32> to vector<8x128xf32>
    %161 = arith.subf %157, %160 : vector<8x128xf32>
    %162 = math.exp %161 : vector<8x128xf32>
    %cst_28 = arith.constant dense<0.000000e+00> : vector<8xf32>
    %163 = vector.multi_reduction <add>, %162, %cst_28 [1] : vector<8x128xf32> to vector<8xf32>
    %164 = vector.shape_cast %163 : vector<8xf32> to vector<8x1xf32>
    %165 = math.log %164 : vector<8x1xf32>
    %166 = vector.broadcast %165 : vector<8x1xf32> to vector<8x128xf32>
    %167 = arith.subf %161, %166 : vector<8x128xf32>
    %c0_29 = arith.constant 0 : index
    %c0_30 = arith.constant 0 : index
    %168 = vector.load %arg3[%c0_29, %c0_30] : memref<8x128xf32, #tpu.memory_space<vmem>>, vector<8x128xf32>
    tpu.vector_store %arg3[%c0_29, %c0_30], %167 {strides = array<i32>} : memref<8x128xf32, #tpu.memory_space<vmem>>, vector<8x128xf32>,
    return
  }
}

</mosaic_0001>

<llo_original>
// kernel: rnn_forward.1
$region0: #{rnn_forward.1}
  #allocation0 [shape = 'u32[]', space=smem, size = 0x4, offset = 0x4, fixed_abs, tag = 'smem constant byte address 0x4 - core index']
  #allocation1 [shape = 'u32[144,128]{1,0:T(1,128)}', space=vmem, size = 0x12000, scoped, tag = 'internal scratch']
  %s0 = inlined_call_operand.vmem [shape: f32[64,16], index: 0, kind: input, shape index: {}]
  %s1 = inlined_call_operand.vmem [shape: f32[16,32], index: 1, kind: input, shape index: {}]
  %s2 = inlined_call_operand.vmem [shape: f32[96,128], index: 2, kind: input, shape index: {}]
  %s3 = inlined_call_operand.vmem [shape: f32[8,128], index: 3, kind: output, shape index: {}]
  %s4 = sld [smem:[#allocation0]]
  $region22: #{rnn_forward.1} parent=0
    _
  %s6 = ssub.s32 1, %s4
  %s7 = scalar_select 0, %s6, %s4
  // Predicated region
  $region2: #{rnn_forward.1} parent=0 // pred_check
    _
  $region3: #{rnn_forward.1} parent=0 // pred_check_branch
    %9 = sbr.rel (0) target = $region5
  $region4: #{rnn_forward.1} parent=0 // pred_region
    _
  $region5: #{rnn_forward.1} parent=0 // pred_fallthru
    _
  // Predicated region
  $region6: #{rnn_forward.1} parent=0 // pred_check
    _
  $region7: #{rnn_forward.1} parent=0 // pred_check_branch
    %11 = sbr.rel (0) target = $region9
  $region8: #{rnn_forward.1} parent=0 // pred_region
    _
  $region9: #{rnn_forward.1} parent=0 // pred_fallthru
    _
  // Predicated region
  $region10: #{rnn_forward.1} parent=0 // pred_check
    _
  $region11: #{rnn_forward.1} parent=0 // pred_check_branch
    %13 = sbr.rel (0) target = $region13
  $region12: #{rnn_forward.1} parent=0 // pred_region
    _
  $region13: #{rnn_forward.1} parent=0 // pred_fallthru
    _
  %v14 = vld [vmem:[%s2] sm:$0xff]
  %v15 = vld [vmem:[%s2 + $0x8] sm:$0xff]
  %v16 = vld [vmem:[%s2 + $0x10] sm:$0xff]
  %v17 = vld [vmem:[%s2 + $0x18] sm:$0xff]
  %v18 = vld [vmem:[%s2 + $0x20] sm:$0xff]
  %v19 = vld [vmem:[%s2 + $0x28] sm:$0xff]
  %v20 = vld [vmem:[%s2 + $0x30] sm:$0x1]
  %v21 = vld [vmem:[%s0] sm:$0xff]
  %v22 = vld [vmem:[%s0 + $0x8] sm:$0xff]
  %v23 = vld [vmem:[%s0 + $0x10] sm:$0xff]
  %v24 = vld [vmem:[%s0 + $0x18] sm:$0xff]
  %v25 = vld [vmem:[%s0 + $0x20] sm:$0xff]
  %v26 = vld [vmem:[%s0 + $0x28] sm:$0xff]
  %v27 = vld [vmem:[%s0 + $0x30] sm:$0xff]
  %v28 = vld [vmem:[%s0 + $0x38] sm:$0xff]
  %v29 = vlaneseq
  %v30 = vshrl.u32 %v29, 7
  %v31 = vsub.s32 0, %v30
  %v32 = vrot.slane %v20, %v31
  %vm33 = vcmask 130048
  %v35 = vsel %vm33, %v21, 0
  %v38 = vsel %vm33, %v22, 0
  %v41 = vsel %vm33, %v23, 0
  %v44 = vsel %vm33, %v24, 0
  %v47 = vsel %vm33, %v25, 0
  %v50 = vsel %vm33, %v26, 0
  %v53 = vsel %vm33, %v27, 0
  %v56 = vsel %vm33, %v28, 0
  %58 = vmatprep.subr.mxu0 0.0
  %59 = vmatpush1.msra.mxu0 %v14
  %60 = vmatprep.subr.mxu0 0.0
  %61 = vmatpush1.msra.mxu0 %v15
  %62 = vmatprep.subr.mxu0 0.0
  %63 = vmatpush1.msra.mxu0 0.0
  %64 = vmatprep.subr.mxu0 0.0
  %65 = vmatpush1.msra.mxu0 0.0
  %66 = vmatprep.subr.mxu0 0.0
  %67 = vmatpush1.msra.mxu0 0.0
  %68 = vmatprep.subr.mxu0 0.0
  %69 = vmatpush1.msra.mxu0 0.0
  %70 = vmatprep.subr.mxu0 0.0
  %71 = vmatpush1.msra.mxu0 0.0
  %72 = vmatprep.subr.mxu0 0.0
  %73 = vmatpush1.msra.mxu0 0.0
  %74 = vmatprep.subr.mxu0 0.0
  %75 = vmatpush1.msra.mxu0 0.0
  %76 = vmatprep.subr.mxu0 0.0
  %77 = vmatpush1.msra.mxu0 0.0
  %78 = vmatprep.subr.mxu0 0.0
  %79 = vmatpush1.msra.mxu0 0.0
  %80 = vmatprep.subr.mxu0 0.0
  %81 = vmatpush1.msra.mxu0 0.0
  %82 = vmatprep.subr.mxu0 0.0
  %83 = vmatpush1.msra.mxu0 0.0
  %84 = vmatprep.subr.mxu0 0.0
  %85 = vmatpush1.msra.mxu0 0.0
  %86 = vmatprep.subr.mxu0 0.0
  %87 = vmatpush1.msra.mxu0 0.0
  %88 = vmatprep.subr.mxu0 0.0
  %89 = vmatpush1.msra.mxu0 0.0
  %90 = vmatprep.subr.mxu0 0.0
  %91 = vmatpush1.msra.mxu0 0.0
  %92 = vmatprep.subr.mxu0 0.0
  %93 = vmatpush1.msra.mxu0 0.0
  %94 = vmatprep.subr.mxu0 0.0
  %95 = vmatpush1.msra.mxu0 0.0
  %96 = vmatprep.subr.mxu0 0.0
  %97 = vmatpush1.msra.mxu0 0.0
  %98 = vmatprep.subr.mxu0 0.0
  %99 = vmatpush1.msra.mxu0 0.0
  %100 = vmatprep.subr.mxu0 0.0
  %101 = vmatpush1.msra.mxu0 0.0
  %102 = vmatprep.subr.mxu0 0.0
  %103 = vmatpush1.msra.mxu0 0.0
  %104 = vmatprep.subr.mxu0 0.0
  %105 = vmatpush1.msra.mxu0 0.0
  %106 = vmatprep.subr.mxu0 0.0
  %107 = vmatpush1.msra.mxu0 0.0
  %108 = vmatprep.subr.mxu0 0.0
  %109 = vmatpush1.msra.mxu0 0.0
  %110 = vmatprep.subr.mxu0 0.0
  %111 = vmatpush1.msra.mxu0 0.0
  %112 = vmatprep.subr.mxu0 0.0
  %113 = vmatpush1.msra.mxu0 0.0
  %114 = vmatprep.subr.mxu0 0.0
  %115 = vmatpush1.msra.mxu0 0.0
  %116 = vmatprep.subr.mxu0 0.0
  %117 = vmatpush1.msra.mxu0 0.0
  %118 = vmatprep.subr.mxu0 0.0
  %119 = vmatpush1.msra.mxu0 0.0
  %120 = vmatprep.subr.mxu0 0.0
  %121 = vmatpush1.msra.mxu0 0.0
  %122 = vmatprep.mubr.f32.mxu0 0.0
  %123 = vmatmul.mubr.f32.gmra.mrb[0].mxu0 %v35
  %v124 = vpop.f32.mrb[0].mxu0
  %v125 = vadd.f32 %v32, %v124
  %v126 = vpop.f32.mrb[0].mxu0
  %127 = vmatprep.mubr.f32.mxu0 0.0
  %128 = vmatmul.mubr.f32.gmra.mrb[0].mxu0 %v38
  %v129 = vpop.f32.mrb[0].mxu0
  %v130 = vadd.f32 %v32, %v129
  %v131 = vpop.f32.mrb[0].mxu0
  %132 = vmatprep.mubr.f32.mxu0 0.0
  %133 = vmatmul.mubr.f32.gmra.mrb[0].mxu0 %v41
  %v134 = vpop.f32.mrb[0].mxu0
  %v135 = vadd.f32 %v32, %v134
  %v136 = vpop.f32.mrb[0].mxu0
  %137 = vmatprep.mubr.f32.mxu0 0.0
  %138 = vmatmul.mubr.f32.gmra.mrb[0].mxu0 %v44
  %v139 = vpop.f32.mrb[0].mxu0
  %v140 = vadd.f32 %v32, %v139
  %v141 = vpop.f32.mrb[0].mxu0
  %142 = vmatprep.mubr.f32.mxu0 0.0
  %143 = vmatmul.mubr.f32.gmra.mrb[0].mxu0 %v47
  %v144 = vpop.f32.mrb[0].mxu0
  %v145 = vadd.f32 %v32, %v144
  %v146 = vpop.f32.mrb[0].mxu0
  %147 = vmatprep.mubr.f32.mxu0 0.0
  %148 = vmatmul.mubr.f32.gmra.mrb[0].mxu0 %v50
  %v149 = vpop.f32.mrb[0].mxu0
  %v150 = vadd.f32 %v32, %v149
  %v151 = vpop.f32.mrb[0].mxu0
  %152 = vmatprep.mubr.f32.mxu0 0.0
  %153 = vmatmul.mubr.f32.gmra.mrb[0].mxu0 %v53
  %v154 = vpop.f32.mrb[0].mxu0
  %v155 = vadd.f32 %v32, %v154
  %v156 = vpop.f32.mrb[0].mxu0
  %157 = vmatprep.mubr.f32.mxu0 0.0
  %158 = vmatmul.mubr.f32.gmra.mrb[0].mxu0 %v56
  %v159 = vpop.f32.mrb[0].mxu0
  %v160 = vadd.f32 %v32, %v159
  %v161 = vpop.f32.mrb[0].mxu0
  %162 = vdwg.mxu0
  %v163 = vld [vmem:[%s1] sm:$0xff]
  %v164 = vld [vmem:[%s1 + $0x8] sm:$0xff]
  %vm165 = vcmask 261120
  %v167 = vsel %vm165, %v163, 0
  %169 = vmatprep.subr.mxu0 0.0
  %170 = vmatpush1.msra.mxu0 %v16
  %171 = vmatprep.subr.mxu0 0.0
  %172 = vmatpush1.msra.mxu0 %v17
  %173 = vmatprep.subr.mxu0 0.0
  %174 = vmatpush1.msra.mxu0 %v18
  %175 = vmatprep.subr.mxu0 0.0
  %176 = vmatpush1.msra.mxu0 %v19
  %177 = vmatprep.subr.mxu0 0.0
  %178 = vmatpush1.msra.mxu0 0.0
  %179 = vmatprep.subr.mxu0 0.0
  %180 = vmatpush1.msra.mxu0 0.0
  %181 = vmatprep.subr.mxu0 0.0
  %182 = vmatpush1.msra.mxu0 0.0
  %183 = vmatprep.subr.mxu0 0.0
  %184 = vmatpush1.msra.mxu0 0.0
  %185 = vmatprep.subr.mxu0 0.0
  %186 = vmatpush1.msra.mxu0 0.0
  %187 = vmatprep.subr.mxu0 0.0
  %188 = vmatpush1.msra.mxu0 0.0
  %189 = vmatprep.subr.mxu0 0.0
  %190 = vmatpush1.msra.mxu0 0.0
  %191 = vmatprep.subr.mxu0 0.0
  %192 = vmatpush1.msra.mxu0 0.0
  %193 = vmatprep.subr.mxu0 0.0
  %194 = vmatpush1.msra.mxu0 0.0
  %195 = vmatprep.subr.mxu0 0.0
  %196 = vmatpush1.msra.mxu0 0.0
  %197 = vmatprep.subr.mxu0 0.0
  %198 = vmatpush1.msra.mxu0 0.0
  %199 = vmatprep.subr.mxu0 0.0
  %200 = vmatpush1.msra.mxu0 0.0
  %201 = vmatprep.subr.mxu0 0.0
  %202 = vmatpush1.msra.mxu0 0.0
  %203 = vmatprep.subr.mxu0 0.0
  %204 = vmatpush1.msra.mxu0 0.0
  %205 = vmatprep.subr.mxu0 0.0
  %206 = vmatpush1.msra.mxu0 0.0
  %207 = vmatprep.subr.mxu0 0.0
  %208 = vmatpush1.msra.mxu0 0.0
  %209 = vmatprep.subr.mxu0 0.0
  %210 = vmatpush1.msra.mxu0 0.0
  %211 = vmatprep.subr.mxu0 0.0
  %212 = vmatpush1.msra.mxu0 0.0
  %213 = vmatprep.subr.mxu0 0.0
  %214 = vmatpush1.msra.mxu0 0.0
  %215 = vmatprep.subr.mxu0 0.0
  %216 = vmatpush1.msra.mxu0 0.0
  %217 = vmatprep.subr.mxu0 0.0
  %218 = vmatpush1.msra.mxu0 0.0
  %219 = vmatprep.subr.mxu0 0.0
  %220 = vmatpush1.msra.mxu0 0.0
  %221 = vmatprep.subr.mxu0 0.0
  %222 = vmatpush1.msra.mxu0 0.0
  %223 = vmatprep.subr.mxu0 0.0
  %224 = vmatpush1.msra.mxu0 0.0
  %225 = vmatprep.subr.mxu0 0.0
  %226 = vmatpush1.msra.mxu0 0.0
  %227 = vmatprep.subr.mxu0 0.0
  %228 = vmatpush1.msra.mxu0 0.0
  %229 = vmatprep.subr.mxu0 0.0
  %230 = vmatpush1.msra.mxu0 0.0
  %231 = vmatprep.subr.mxu0 0.0
  %232 = vmatpush1.msra.mxu0 0.0
  %233 = vmatprep.mubr.f32.mxu0 0.0
  %234 = vmatmul.mubr.f32.gmra.mrb[0].mxu0 %v167
  %v235 = vpop.f32.mrb[0].mxu0
  %v236 = vadd.f32 0.0, %v235
  %v237 = vpop.f32.mrb[0].mxu0
  %238 = vdwg.mxu0
  %v239 = vadd.f32 %v125, %v236
  %v240 = vxor.u32 %v239, 2147483648
  %v241 = vmul.f32 %v240, 1.442695
  %v242 = vpow.pop %v241
  %v243 = vadd.f32 %v242, 1.0
  %v244 = vrcp.pop %v243
  %v245 = vmul.f32 1.0, %v244
  %v246 = vtanh.pop %v239
  %248 = vrot.lane.b32.xlu0 %v164, 32
  %v249 = vpop.permute.xlu0 %248
  %v251 = vmul.f32 %v245, %v249
  %253 = vrot.lane.b32.xlu0 %v246, 64
  %v254 = vpop.permute.xlu0 %253
  %v256 = vmul.f32 %v245, %v254
  %258 = vrot.lane.b32.xlu0 %v256, 32
  %v259 = vpop.permute.xlu0 %258
  %v261 = vadd.f32 %v251, %v259
  %v262 = vtanh.pop %v261
  %264 = vrot.lane.b32.xlu0 %v262, 64
  %v265 = vpop.permute.xlu0 %264
  %v267 = vmul.f32 %v245, %v265
  %269 = vrot.lane.b32.xlu0 %v267, 32
  %v270 = vpop.permute.xlu0 %269
  %v271 = vsel %vm165, %v270, 0
  %273 = vmatprep.subr.mxu0 0.0
  %274 = vmatpush1.msra.mxu0 %v16
  %275 = vmatprep.subr.mxu0 0.0
  %276 = vmatpush1.msra.mxu0 %v17
  %277 = vmatprep.subr.mxu0 0.0
  %278 = vmatpush1.msra.mxu0 %v18
  %279 = vmatprep.subr.mxu0 0.0
  %280 = vmatpush1.msra.mxu0 %v19
  %281 = vmatprep.subr.mxu0 0.0
  %282 = vmatpush1.msra.mxu0 0.0
  %283 = vmatprep.subr.mxu0 0.0
  %284 = vmatpush1.msra.mxu0 0.0
  %285 = vmatprep.subr.mxu0 0.0
  %286 = vmatpush1.msra.mxu0 0.0
  %287 = vmatprep.subr.mxu0 0.0
  %288 = vmatpush1.msra.mxu0 0.0
  %289 = vmatprep.subr.mxu0 0.0
  %290 = vmatpush1.msra.mxu0 0.0
  %291 = vmatprep.subr.mxu0 0.0
  %292 = vmatpush1.msra.mxu0 0.0
  %293 = vmatprep.subr.mxu0 0.0
  %294 = vmatpush1.msra.mxu0 0.0
  %295 = vmatprep.subr.mxu0 0.0
  %296 = vmatpush1.msra.mxu0 0.0
  %297 = vmatprep.subr.mxu0 0.0
  %298 = vmatpush1.msra.mxu0 0.0
  %299 = vmatprep.subr.mxu0 0.0
  %300 = vmatpush1.msra.mxu0 0.0
  %301 = vmatprep.subr.mxu0 0.0
  %302 = vmatpush1.msra.mxu0 0.0
  %303 = vmatprep.subr.mxu0 0.0
  %304 = vmatpush1.msra.mxu0 0.0
  %305 = vmatprep.subr.mxu0 0.0
  %306 = vmatpush1.msra.mxu0 0.0
  %307 = vmatprep.subr.mxu0 0.0
  %308 = vmatpush1.msra.mxu0 0.0
  %309 = vmatprep.subr.mxu0 0.0
  %310 = vmatpush1.msra.mxu0 0.0
  %311 = vmatprep.subr.mxu0 0.0
  %312 = vmatpush1.msra.mxu0 0.0
  %313 = vmatprep.subr.mxu0 0.0
  %314 = vmatpush1.msra.mxu0 0.0
  %315 = vmatprep.subr.mxu0 0.0
  %316 = vmatpush1.msra.mxu0 0.0
  %317 = vmatprep.subr.mxu0 0.0
  %318 = vmatpush1.msra.mxu0 0.0
  %319 = vmatprep.subr.mxu0 0.0
  %320 = vmatpush1.msra.mxu0 0.0
  %321 = vmatprep.subr.mxu0 0.0
  %322 = vmatpush1.msra.mxu0 0.0
  %323 = vmatprep.subr.mxu0 0.0
  %324 = vmatpush1.msra.mxu0 0.0
  %325 = vmatprep.subr.mxu0 0.0
  %326 = vmatpush1.msra.mxu0 0.0
  %327 = vmatprep.subr.mxu0 0.0
  %328 = vmatpush1.msra.mxu0 0.0
  %329 = vmatprep.subr.mxu0 0.0
  %330 = vmatpush1.msra.mxu0 0.0
  %331 = vmatprep.subr.mxu0 0.0
  %332 = vmatpush1.msra.mxu0 0.0
  %333 = vmatprep.subr.mxu0 0.0
  %334 = vmatpush1.msra.mxu0 0.0
  %335 = vmatprep.subr.mxu0 0.0
  %336 = vmatpush1.msra.mxu0 0.0
  %337 = vmatprep.mubr.f32.mxu0 0.0
  %338 = vmatmul.mubr.f32.gmra.mrb[0].mxu0 %v271
  %v339 = vpop.f32.mrb[0].mxu0
  %v340 = vadd.f32 0.0, %v339
  %v341 = vpop.f32.mrb[0].mxu0
  %342 = vdwg.mxu0
  %v343 = vadd.f32 %v130, %v340
  %v344 = vxor.u32 %v343, 2147483648
  %v345 = vmul.f32 %v344, 1.442695
  %v346 = vpow.pop %v345
  %v347 = vadd.f32 %v346, 1.0
  %v348 = vrcp.pop %v347
  %v349 = vmul.f32 1.0, %v348
  %v350 = vtanh.pop %v343
  %v351 = vmul.f32 %v349, %v261
  %353 = vrot.lane.b32.xlu0 %v350, 64
  %v354 = vpop.permute.xlu0 %353
  %v356 = vmul.f32 %v349, %v354
  %358 = vrot.lane.b32.xlu0 %v356, 32
  %v359 = vpop.permute.xlu0 %358
  %v361 = vadd.f32 %v351, %v359
  %v362 = vtanh.pop %v361
  %364 = vrot.lane.b32.xlu0 %v362, 64
  %v365 = vpop.permute.xlu0 %364
  %v367 = vmul.f32 %v349, %v365
  %369 = vrot.lane.b32.xlu0 %v367, 32
  %v370 = vpop.permute.xlu0 %369
  %v371 = vsel %vm165, %v370, 0
  %373 = vmatprep.subr.mxu0 0.0
  %374 = vmatpush1.msra.mxu0 %v16
  %375 = vmatprep.subr.mxu0 0.0
  %376 = vmatpush1.msra.mxu0 %v17
  %377 = vmatprep.subr.mxu0 0.0
  %378 = vmatpush1.msra.mxu0 %v18
  %379 = vmatprep.subr.mxu0 0.0
  %380 = vmatpush1.msra.mxu0 %v19
  %381 = vmatprep.subr.mxu0 0.0
  %382 = vmatpush1.msra.mxu0 0.0
  %383 = vmatprep.subr.mxu0 0.0
  %384 = vmatpush1.msra.mxu0 0.0
  %385 = vmatprep.subr.mxu0 0.0
  %386 = vmatpush1.msra.mxu0 0.0
  %387 = vmatprep.subr.mxu0 0.0
  %388 = vmatpush1.msra.mxu0 0.0
  %389 = vmatprep.subr.mxu0 0.0
  %390 = vmatpush1.msra.mxu0 0.0
  %391 = vmatprep.subr.mxu0 0.0
  %392 = vmatpush1.msra.mxu0 0.0
  %393 = vmatprep.subr.mxu0 0.0
  %394 = vmatpush1.msra.mxu0 0.0
  %395 = vmatprep.subr.mxu0 0.0
  %396 = vmatpush1.msra.mxu0 0.0
  %397 = vmatprep.subr.mxu0 0.0
  %398 = vmatpush1.msra.mxu0 0.0
  %399 = vmatprep.subr.mxu0 0.0
  %400 = vmatpush1.msra.mxu0 0.0
  %401 = vmatprep.subr.mxu0 0.0
  %402 = vmatpush1.msra.mxu0 0.0
  %403 = vmatprep.subr.mxu0 0.0
  %404 = vmatpush1.msra.mxu0 0.0
  %405 = vmatprep.subr.mxu0 0.0
  %406 = vmatpush1.msra.mxu0 0.0
  %407 = vmatprep.subr.mxu0 0.0
  %408 = vmatpush1.msra.mxu0 0.0
  %409 = vmatprep.subr.mxu0 0.0
  %410 = vmatpush1.msra.mxu0 0.0
  %411 = vmatprep.subr.mxu0 0.0
  %412 = vmatpush1.msra.mxu0 0.0
  %413 = vmatprep.subr.mxu0 0.0
  %414 = vmatpush1.msra.mxu0 0.0
  %415 = vmatprep.subr.mxu0 0.0
  %416 = vmatpush1.msra.mxu0 0.0
  %417 = vmatprep.subr.mxu0 0.0
  %418 = vmatpush1.msra.mxu0 0.0
  %419 = vmatprep.subr.mxu0 0.0
  %420 = vmatpush1.msra.mxu0 0.0
  %421 = vmatprep.subr.mxu0 0.0
  %422 = vmatpush1.msra.mxu0 0.0
  %423 = vmatprep.subr.mxu0 0.0
  %424 = vmatpush1.msra.mxu0 0.0
  %425 = vmatprep.subr.mxu0 0.0
  %426 = vmatpush1.msra.mxu0 0.0
  %427 = vmatprep.subr.mxu0 0.0
  %428 = vmatpush1.msra.mxu0 0.0
  %429 = vmatprep.subr.mxu0 0.0
  %430 = vmatpush1.msra.mxu0 0.0
  %431 = vmatprep.subr.mxu0 0.0
  %432 = vmatpush1.msra.mxu0 0.0
  %433 = vmatprep.subr.mxu0 0.0
  %434 = vmatpush1.msra.mxu0 0.0
  %435 = vmatprep.subr.mxu0 0.0
  %436 = vmatpush1.msra.mxu0 0.0
  %437 = vmatprep.mubr.f32.mxu0 0.0
  %438 = vmatmul.mubr.f32.gmra.mrb[0].mxu0 %v371
  %v439 = vpop.f32.mrb[0].mxu0
  %v440 = vadd.f32 0.0, %v439
  %v441 = vpop.f32.mrb[0].mxu0
  %442 = vdwg.mxu0
  %v443 = vadd.f32 %v135, %v440
  %v444 = vxor.u32 %v443, 2147483648
  %v445 = vmul.f32 %v444, 1.442695
  %v446 = vpow.pop %v445
  %v447 = vadd.f32 %v446, 1.0
  %v448 = vrcp.pop %v447
  %v449 = vmul.f32 1.0, %v448
  %v450 = vtanh.pop %v443
  %v451 = vmul.f32 %v449, %v361
  %453 = vrot.lane.b32.xlu0 %v450, 64
  %v454 = vpop.permute.xlu0 %453
  %v456 = vmul.f32 %v449, %v454
  %458 = vrot.lane.b32.xlu0 %v456, 32
  %v459 = vpop.permute.xlu0 %458
  %v461 = vadd.f32 %v451, %v459
  %v462 = vtanh.pop %v461
  %464 = vrot.lane.b32.xlu0 %v462, 64
  %v465 = vpop.permute.xlu0 %464
  %v467 = vmul.f32 %v449, %v465
  %469 = vrot.lane.b32.xlu0 %v467, 32
  %v470 = vpop.permute.xlu0 %469
  %v471 = vsel %vm165, %v470, 0
  %473 = vmatprep.subr.mxu0 0.0
  %474 = vmatpush1.msra.mxu0 %v16
  %475 = vmatprep.subr.mxu0 0.0
  %476 = vmatpush1.msra.mxu0 %v17
  %477 = vmatprep.subr.mxu0 0.0
  %478 = vmatpush1.msra.mxu0 %v18
  %479 = vmatprep.subr.mxu0 0.0
  %480 = vmatpush1.msra.mxu0 %v19
  %481 = vmatprep.subr.mxu0 0.0
  %482 = vmatpush1.msra.mxu0 0.0
  %483 = vmatprep.subr.mxu0 0.0
  %484 = vmatpush1.msra.mxu0 0.0
  %485 = vmatprep.subr.mxu0 0.0
  %486 = vmatpush1.msra.mxu0 0.0
  %487 = vmatprep.subr.mxu0 0.0
  %488 = vmatpush1.msra.mxu0 0.0
  %489 = vmatprep.subr.mxu0 0.0
  %490 = vmatpush1.msra.mxu0 0.0
  %491 = vmatprep.subr.mxu0 0.0
  %492 = vmatpush1.msra.mxu0 0.0
  %493 = vmatprep.subr.mxu0 0.0
  %494 = vmatpush1.msra.mxu0 0.0
  %495 = vmatprep.subr.mxu0 0.0
  %496 = vmatpush1.msra.mxu0 0.0
  %497 = vmatprep.subr.mxu0 0.0
  %498 = vmatpush1.msra.mxu0 0.0
  %499 = vmatprep.subr.mxu0 0.0
  %500 = vmatpush1.msra.mxu0 0.0
  %501 = vmatprep.subr.mxu0 0.0
  %502 = vmatpush1.msra.mxu0 0.0
  %503 = vmatprep.subr.mxu0 0.0
  %504 = vmatpush1.msra.mxu0 0.0
  %505 = vmatprep.subr.mxu0 0.0
  %506 = vmatpush1.msra.mxu0 0.0
  %507 = vmatprep.subr.mxu0 0.0
  %508 = vmatpush1.msra.mxu0 0.0
  %509 = vmatprep.subr.mxu0 0.0
  %510 = vmatpush1.msra.mxu0 0.0
  %511 = vmatprep.subr.mxu0 0.0
  %512 = vmatpush1.msra.mxu0 0.0
  %513 = vmatprep.subr.mxu0 0.0
  %514 = vmatpush1.msra.mxu0 0.0
  %515 = vmatprep.subr.mxu0 0.0
  %516 = vmatpush1.msra.mxu0 0.0
  %517 = vmatprep.subr.mxu0 0.0
  %518 = vmatpush1.msra.mxu0 0.0
  %519 = vmatprep.subr.mxu0 0.0
  %520 = vmatpush1.msra.mxu0 0.0
  %521 = vmatprep.subr.mxu0 0.0
  %522 = vmatpush1.msra.mxu0 0.0
  %523 = vmatprep.subr.mxu0 0.0
  %524 = vmatpush1.msra.mxu0 0.0
  %525 = vmatprep.subr.mxu0 0.0
  %526 = vmatpush1.msra.mxu0 0.0
  %527 = vmatprep.subr.mxu0 0.0
  %528 = vmatpush1.msra.mxu0 0.0
  %529 = vmatprep.subr.mxu0 0.0
  %530 = vmatpush1.msra.mxu0 0.0
  %531 = vmatprep.subr.mxu0 0.0
  %532 = vmatpush1.msra.mxu0 0.0
  %533 = vmatprep.subr.mxu0 0.0
  %534 = vmatpush1.msra.mxu0 0.0
  %535 = vmatprep.subr.mxu0 0.0
  %536 = vmatpush1.msra.mxu0 0.0
  %537 = vmatprep.mubr.f32.mxu0 0.0
  %538 = vmatmul.mubr.f32.gmra.mrb[0].mxu0 %v471
  %v539 = vpop.f32.mrb[0].mxu0
  %v540 = vadd.f32 0.0, %v539
  %v541 = vpop.f32.mrb[0].mxu0
  %542 = vdwg.mxu0
  %v543 = vadd.f32 %v140, %v540
  %v544 = vxor.u32 %v543, 2147483648
  %v545 = vmul.f32 %v544, 1.442695
  %v546 = vpow.pop %v545
  %v547 = vadd.f32 %v546, 1.0
  %v548 = vrcp.pop %v547
  %v549 = vmul.f32 1.0, %v548
  %v550 = vtanh.pop %v543
  %v551 = vmul.f32 %v549, %v461
  %553 = vrot.lane.b32.xlu0 %v550, 64
  %v554 = vpop.permute.xlu0 %553
  %v556 = vmul.f32 %v549, %v554
  %558 = vrot.lane.b32.xlu0 %v556, 32
  %v559 = vpop.permute.xlu0 %558
  %v561 = vadd.f32 %v551, %v559
  %v562 = vtanh.pop %v561
  %564 = vrot.lane.b32.xlu0 %v562, 64
  %v565 = vpop.permute.xlu0 %564
  %v567 = vmul.f32 %v549, %v565
  %569 = vrot.lane.b32.xlu0 %v567, 32
  %v570 = vpop.permute.xlu0 %569
  %v571 = vsel %vm165, %v570, 0
  %573 = vmatprep.subr.mxu0 0.0
  %574 = vmatpush1.msra.mxu0 %v16
  %575 = vmatprep.subr.mxu0 0.0
  %576 = vmatpush1.msra.mxu0 %v17
  %577 = vmatprep.subr.mxu0 0.0
  %578 = vmatpush1.msra.mxu0 %v18
  %579 = vmatprep.subr.mxu0 0.0
  %580 = vmatpush1.msra.mxu0 %v19
  %581 = vmatprep.subr.mxu0 0.0
  %582 = vmatpush1.msra.mxu0 0.0
  %583 = vmatprep.subr.mxu0 0.0
  %584 = vmatpush1.msra.mxu0 0.0
  %585 = vmatprep.subr.mxu0 0.0
  %586 = vmatpush1.msra.mxu0 0.0
  %587 = vmatprep.subr.mxu0 0.0
  %588 = vmatpush1.msra.mxu0 0.0
  %589 = vmatprep.subr.mxu0 0.0
  %590 = vmatpush1.msra.mxu0 0.0
  %591 = vmatprep.subr.mxu0 0.0
  %592 = vmatpush1.msra.mxu0 0.0
  %593 = vmatprep.subr.mxu0 0.0
  %594 = vmatpush1.msra.mxu0 0.0
  %595 = vmatprep.subr.mxu0 0.0
  %596 = vmatpush1.msra.mxu0 0.0
  %597 = vmatprep.subr.mxu0 0.0
  %598 = vmatpush1.msra.mxu0 0.0
  %599 = vmatprep.subr.mxu0 0.0
  %600 = vmatpush1.msra.mxu0 0.0
  %601 = vmatprep.subr.mxu0 0.0
  %602 = vmatpush1.msra.mxu0 0.0
  %603 = vmatprep.subr.mxu0 0.0
  %604 = vmatpush1.msra.mxu0 0.0
  %605 = vmatprep.subr.mxu0 0.0
  %606 = vmatpush1.msra.mxu0 0.0
  %607 = vmatprep.subr.mxu0 0.0
  %608 = vmatpush1.msra.mxu0 0.0
  %609 = vmatprep.subr.mxu0 0.0
  %610 = vmatpush1.msra.mxu0 0.0
  %611 = vmatprep.subr.mxu0 0.0
  %612 = vmatpush1.msra.mxu0 0.0
  %613 = vmatprep.subr.mxu0 0.0
  %614 = vmatpush1.msra.mxu0 0.0
  %615 = vmatprep.subr.mxu0 0.0
  %616 = vmatpush1.msra.mxu0 0.0
  %617 = vmatprep.subr.mxu0 0.0
  %618 = vmatpush1.msra.mxu0 0.0
  %619 = vmatprep.subr.mxu0 0.0
  %620 = vmatpush1.msra.mxu0 0.0
  %621 = vmatprep.subr.mxu0 0.0
  %622 = vmatpush1.msra.mxu0 0.0
  %623 = vmatprep.subr.mxu0 0.0
  %624 = vmatpush1.msra.mxu0 0.0
  %625 = vmatprep.subr.mxu0 0.0
  %626 = vmatpush1.msra.mxu0 0.0
  %627 = vmatprep.subr.mxu0 0.0
  %628 = vmatpush1.msra.mxu0 0.0
  %629 = vmatprep.subr.mxu0 0.0
  %630 = vmatpush1.msra.mxu0 0.0
  %631 = vmatprep.subr.mxu0 0.0
  %632 = vmatpush1.msra.mxu0 0.0
  %633 = vmatprep.subr.mxu0 0.0
  %634 = vmatpush1.msra.mxu0 0.0
  %635 = vmatprep.subr.mxu0 0.0
  %636 = vmatpush1.msra.mxu0 0.0
  %637 = vmatprep.mubr.f32.mxu0 0.0
  %638 = vmatmul.mubr.f32.gmra.mrb[0].mxu0 %v571
  %v639 = vpop.f32.mrb[0].mxu0
  %v640 = vadd.f32 0.0, %v639
  %v641 = vpop.f32.mrb[0].mxu0
  %642 = vdwg.mxu0
  %v643 = vadd.f32 %v145, %v640
  %v644 = vxor.u32 %v643, 2147483648
  %v645 = vmul.f32 %v644, 1.442695
  %v646 = vpow.pop %v645
  %v647 = vadd.f32 %v646, 1.0
  %v648 = vrcp.pop %v647
  %v649 = vmul.f32 1.0, %v648
  %v650 = vtanh.pop %v643
  %v651 = vmul.f32 %v649, %v561
  %653 = vrot.lane.b32.xlu0 %v650, 64
  %v654 = vpop.permute.xlu0 %653
  %v656 = vmul.f32 %v649, %v654
  %658 = vrot.lane.b32.xlu0 %v656, 32
  %v659 = vpop.permute.xlu0 %658
  %v661 = vadd.f32 %v651, %v659
  %v662 = vtanh.pop %v661
  %664 = vrot.lane.b32.xlu0 %v662, 64
  %v665 = vpop.permute.xlu0 %664
  %v667 = vmul.f32 %v649, %v665
  %669 = vrot.lane.b32.xlu0 %v667, 32
  %v670 = vpop.permute.xlu0 %669
  %v671 = vsel %vm165, %v670, 0
  %673 = vmatprep.subr.mxu0 0.0
  %674 = vmatpush1.msra.mxu0 %v16
  %675 = vmatprep.subr.mxu0 0.0
  %676 = vmatpush1.msra.mxu0 %v17
  %677 = vmatprep.subr.mxu0 0.0
  %678 = vmatpush1.msra.mxu0 %v18
  %679 = vmatprep.subr.mxu0 0.0
  %680 = vmatpush1.msra.mxu0 %v19
  %681 = vmatprep.subr.mxu0 0.0
  %682 = vmatpush1.msra.mxu0 0.0
  %683 = vmatprep.subr.mxu0 0.0
  %684 = vmatpush1.msra.mxu0 0.0
  %685 = vmatprep.subr.mxu0 0.0
  %686 = vmatpush1.msra.mxu0 0.0
  %687 = vmatprep.subr.mxu0 0.0
  %688 = vmatpush1.msra.mxu0 0.0
  %689 = vmatprep.subr.mxu0 0.0
  %690 = vmatpush1.msra.mxu0 0.0
  %691 = vmatprep.subr.mxu0 0.0
  %692 = vmatpush1.msra.mxu0 0.0
  %693 = vmatprep.subr.mxu0 0.0
  %694 = vmatpush1.msra.mxu0 0.0
  %695 = vmatprep.subr.mxu0 0.0
  %696 = vmatpush1.msra.mxu0 0.0
  %697 = vmatprep.subr.mxu0 0.0
  %698 = vmatpush1.msra.mxu0 0.0
  %699 = vmatprep.subr.mxu0 0.0
  %700 = vmatpush1.msra.mxu0 0.0
  %701 = vmatprep.subr.mxu0 0.0
  %702 = vmatpush1.msra.mxu0 0.0
  %703 = vmatprep.subr.mxu0 0.0
  %704 = vmatpush1.msra.mxu0 0.0
  %705 = vmatprep.subr.mxu0 0.0
  %706 = vmatpush1.msra.mxu0 0.0
  %707 = vmatprep.subr.mxu0 0.0
  %708 = vmatpush1.msra.mxu0 0.0
  %709 = vmatprep.subr.mxu0 0.0
  %710 = vmatpush1.msra.mxu0 0.0
  %711 = vmatprep.subr.mxu0 0.0
  %712 = vmatpush1.msra.mxu0 0.0
  %713 = vmatprep.subr.mxu0 0.0
  %714 = vmatpush1.msra.mxu0 0.0
  %715 = vmatprep.subr.mxu0 0.0
  %716 = vmatpush1.msra.mxu0 0.0
  %717 = vmatprep.subr.mxu0 0.0
  %718 = vmatpush1.msra.mxu0 0.0
  %719 = vmatprep.subr.mxu0 0.0
  %720 = vmatpush1.msra.mxu0 0.0
  %721 = vmatprep.subr.mxu0 0.0
  %722 = vmatpush1.msra.mxu0 0.0
  %723 = vmatprep.subr.mxu0 0.0
  %724 = vmatpush1.msra.mxu0 0.0
  %725 = vmatprep.subr.mxu0 0.0
  %726 = vmatpush1.msra.mxu0 0.0
  %727 = vmatprep.subr.mxu0 0.0
  %728 = vmatpush1.msra.mxu0 0.0
  %729 = vmatprep.subr.mxu0 0.0
  %730 = vmatpush1.msra.mxu0 0.0
  %731 = vmatprep.subr.mxu0 0.0
  %732 = vmatpush1.msra.mxu0 0.0
  %733 = vmatprep.subr.mxu0 0.0
  %734 = vmatpush1.msra.mxu0 0.0
  %735 = vmatprep.subr.mxu0 0.0
  %736 = vmatpush1.msra.mxu0 0.0
  %737 = vmatprep.mubr.f32.mxu0 0.0
  %738 = vmatmul.mubr.f32.gmra.mrb[0].mxu0 %v671
  %v739 = vpop.f32.mrb[0].mxu0
  %v740 = vadd.f32 0.0, %v739
  %v741 = vpop.f32.mrb[0].mxu0
  %742 = vdwg.mxu0
  %v743 = vadd.f32 %v150, %v740
  %v744 = vxor.u32 %v743, 2147483648
  %v745 = vmul.f32 %v744, 1.442695
  %v746 = vpow.pop %v745
  %v747 = vadd.f32 %v746, 1.0
  %v748 = vrcp.pop %v747
  %v749 = vmul.f32 1.0, %v748
  %v750 = vtanh.pop %v743
  %v751 = vmul.f32 %v749, %v661
  %753 = vrot.lane.b32.xlu0 %v750, 64
  %v754 = vpop.permute.xlu0 %753
  %v756 = vmul.f32 %v749, %v754
  %758 = vrot.lane.b32.xlu0 %v756, 32
  %v759 = vpop.permute.xlu0 %758
  %v761 = vadd.f32 %v751, %v759
  %v762 = vtanh.pop %v761
  %764 = vrot.lane.b32.xlu0 %v762, 64
  %v765 = vpop.permute.xlu0 %764
  %v767 = vmul.f32 %v749, %v765
  %769 = vrot.lane.b32.xlu0 %v767, 32
  %v770 = vpop.permute.xlu0 %769
  %v771 = vsel %vm165, %v770, 0
  %773 = vmatprep.subr.mxu0 0.0
  %774 = vmatpush1.msra.mxu0 %v16
  %775 = vmatprep.subr.mxu0 0.0
  %776 = vmatpush1.msra.mxu0 %v17
  %777 = vmatprep.subr.mxu0 0.0
  %778 = vmatpush1.msra.mxu0 %v18
  %779 = vmatprep.subr.mxu0 0.0
  %780 = vmatpush1.msra.mxu0 %v19
  %781 = vmatprep.subr.mxu0 0.0
  %782 = vmatpush1.msra.mxu0 0.0
  %783 = vmatprep.subr.mxu0 0.0
  %784 = vmatpush1.msra.mxu0 0.0
  %785 = vmatprep.subr.mxu0 0.0
  %786 = vmatpush1.msra.mxu0 0.0
  %787 = vmatprep.subr.mxu0 0.0
  %788 = vmatpush1.msra.mxu0 0.0
  %789 = vmatprep.subr.mxu0 0.0
  %790 = vmatpush1.msra.mxu0 0.0
  %791 = vmatprep.subr.mxu0 0.0
  %792 = vmatpush1.msra.mxu0 0.0
  %793 = vmatprep.subr.mxu0 0.0
  %794 = vmatpush1.msra.mxu0 0.0
  %795 = vmatprep.subr.mxu0 0.0
  %796 = vmatpush1.msra.mxu0 0.0
  %797 = vmatprep.subr.mxu0 0.0
  %798 = vmatpush1.msra.mxu0 0.0
  %799 = vmatprep.subr.mxu0 0.0
  %800 = vmatpush1.msra.mxu0 0.0
  %801 = vmatprep.subr.mxu0 0.0
  %802 = vmatpush1.msra.mxu0 0.0
  %803 = vmatprep.subr.mxu0 0.0
  %804 = vmatpush1.msra.mxu0 0.0
  %805 = vmatprep.subr.mxu0 0.0
  %806 = vmatpush1.msra.mxu0 0.0
  %807 = vmatprep.subr.mxu0 0.0
  %808 = vmatpush1.msra.mxu0 0.0
  %809 = vmatprep.subr.mxu0 0.0
  %810 = vmatpush1.msra.mxu0 0.0
  %811 = vmatprep.subr.mxu0 0.0
  %812 = vmatpush1.msra.mxu0 0.0
  %813 = vmatprep.subr.mxu0 0.0
  %814 = vmatpush1.msra.mxu0 0.0
  %815 = vmatprep.subr.mxu0 0.0
  %816 = vmatpush1.msra.mxu0 0.0
  %817 = vmatprep.subr.mxu0 0.0
  %818 = vmatpush1.msra.mxu0 0.0
  %819 = vmatprep.subr.mxu0 0.0
  %820 = vmatpush1.msra.mxu0 0.0
  %821 = vmatprep.subr.mxu0 0.0
  %822 = vmatpush1.msra.mxu0 0.0
  %823 = vmatprep.subr.mxu0 0.0
  %824 = vmatpush1.msra.mxu0 0.0
  %825 = vmatprep.subr.mxu0 0.0
  %826 = vmatpush1.msra.mxu0 0.0
  %827 = vmatprep.subr.mxu0 0.0
  %828 = vmatpush1.msra.mxu0 0.0
  %829 = vmatprep.subr.mxu0 0.0
  %830 = vmatpush1.msra.mxu0 0.0
  %831 = vmatprep.subr.mxu0 0.0
  %832 = vmatpush1.msra.mxu0 0.0
  %833 = vmatprep.subr.mxu0 0.0
  %834 = vmatpush1.msra.mxu0 0.0
  %835 = vmatprep.subr.mxu0 0.0
  %836 = vmatpush1.msra.mxu0 0.0
  %837 = vmatprep.mubr.f32.mxu0 0.0
  %838 = vmatmul.mubr.f32.gmra.mrb[0].mxu0 %v771
  %v839 = vpop.f32.mrb[0].mxu0
  %v840 = vadd.f32 0.0, %v839
  %v841 = vpop.f32.mrb[0].mxu0
  %842 = vdwg.mxu0
  %v843 = vadd.f32 %v155, %v840
  %v844 = vxor.u32 %v843, 2147483648
  %v845 = vmul.f32 %v844, 1.442695
  %v846 = vpow.pop %v845
  %v847 = vadd.f32 %v846, 1.0
  %v848 = vrcp.pop %v847
  %v849 = vmul.f32 1.0, %v848
  %v850 = vtanh.pop %v843
  %v851 = vmul.f32 %v849, %v761
  %853 = vrot.lane.b32.xlu0 %v850, 64
  %v854 = vpop.permute.xlu0 %853
  %v856 = vmul.f32 %v849, %v854
  %858 = vrot.lane.b32.xlu0 %v856, 32
  %v859 = vpop.permute.xlu0 %858
  %v861 = vadd.f32 %v851, %v859
  %v862 = vtanh.pop %v861
  %864 = vrot.lane.b32.xlu0 %v862, 64
  %v865 = vpop.permute.xlu0 %864
  %v867 = vmul.f32 %v849, %v865
  %869 = vrot.lane.b32.xlu0 %v867, 32
  %v870 = vpop.permute.xlu0 %869
  %v871 = vsel %vm165, %v870, 0
  %873 = vmatprep.subr.mxu0 0.0
  %874 = vmatpush1.msra.mxu0 %v16
  %875 = vmatprep.subr.mxu0 0.0
  %876 = vmatpush1.msra.mxu0 %v17
  %877 = vmatprep.subr.mxu0 0.0
  %878 = vmatpush1.msra.mxu0 %v18
  %879 = vmatprep.subr.mxu0 0.0
  %880 = vmatpush1.msra.mxu0 %v19
  %881 = vmatprep.subr.mxu0 0.0
  %882 = vmatpush1.msra.mxu0 0.0
  %883 = vmatprep.subr.mxu0 0.0
  %884 = vmatpush1.msra.mxu0 0.0
  %885 = vmatprep.subr.mxu0 0.0
  %886 = vmatpush1.msra.mxu0 0.0
  %887 = vmatprep.subr.mxu0 0.0
  %888 = vmatpush1.msra.mxu0 0.0
  %889 = vmatprep.subr.mxu0 0.0
  %890 = vmatpush1.msra.mxu0 0.0
  %891 = vmatprep.subr.mxu0 0.0
  %892 = vmatpush1.msra.mxu0 0.0
  %893 = vmatprep.subr.mxu0 0.0
  %894 = vmatpush1.msra.mxu0 0.0
  %895 = vmatprep.subr.mxu0 0.0
  %896 = vmatpush1.msra.mxu0 0.0
  %897 = vmatprep.subr.mxu0 0.0
  %898 = vmatpush1.msra.mxu0 0.0
  %899 = vmatprep.subr.mxu0 0.0
  %900 = vmatpush1.msra.mxu0 0.0
  %901 = vmatprep.subr.mxu0 0.0
  %902 = vmatpush1.msra.mxu0 0.0
  %903 = vmatprep.subr.mxu0 0.0
  %904 = vmatpush1.msra.mxu0 0.0
  %905 = vmatprep.subr.mxu0 0.0
  %906 = vmatpush1.msra.mxu0 0.0
  %907 = vmatprep.subr.mxu0 0.0
  %908 = vmatpush1.msra.mxu0 0.0
  %909 = vmatprep.subr.mxu0 0.0
  %910 = vmatpush1.msra.mxu0 0.0
  %911 = vmatprep.subr.mxu0 0.0
  %912 = vmatpush1.msra.mxu0 0.0
  %913 = vmatprep.subr.mxu0 0.0
  %914 = vmatpush1.msra.mxu0 0.0
  %915 = vmatprep.subr.mxu0 0.0
  %916 = vmatpush1.msra.mxu0 0.0
  %917 = vmatprep.subr.mxu0 0.0
  %918 = vmatpush1.msra.mxu0 0.0
  %919 = vmatprep.subr.mxu0 0.0
  %920 = vmatpush1.msra.mxu0 0.0
  %921 = vmatprep.subr.mxu0 0.0
  %922 = vmatpush1.msra.mxu0 0.0
  %923 = vmatprep.subr.mxu0 0.0
  %924 = vmatpush1.msra.mxu0 0.0
  %925 = vmatprep.subr.mxu0 0.0
  %926 = vmatpush1.msra.mxu0 0.0
  %927 = vmatprep.subr.mxu0 0.0
  %928 = vmatpush1.msra.mxu0 0.0
  %929 = vmatprep.subr.mxu0 0.0
  %930 = vmatpush1.msra.mxu0 0.0
  %931 = vmatprep.subr.mxu0 0.0
  %932 = vmatpush1.msra.mxu0 0.0
  %933 = vmatprep.subr.mxu0 0.0
  %934 = vmatpush1.msra.mxu0 0.0
  %935 = vmatprep.subr.mxu0 0.0
  %936 = vmatpush1.msra.mxu0 0.0
  %937 = vmatprep.mubr.f32.mxu0 0.0
  %938 = vmatmul.mubr.f32.gmra.mrb[0].mxu0 %v871
  %v939 = vpop.f32.mrb[0].mxu0
  %v940 = vadd.f32 0.0, %v939
  %v941 = vpop.f32.mrb[0].mxu0
  %942 = vdwg.mxu0
  %v943 = vadd.f32 %v160, %v940
  %v944 = vxor.u32 %v943, 2147483648
  %v945 = vmul.f32 %v944, 1.442695
  %v946 = vpow.pop %v945
  %v947 = vadd.f32 %v946, 1.0
  %v948 = vrcp.pop %v947
  %v949 = vmul.f32 1.0, %v948
  %v950 = vtanh.pop %v943
  %v951 = vmul.f32 %v949, %v861
  %953 = vrot.lane.b32.xlu0 %v950, 64
  %v954 = vpop.permute.xlu0 %953
  %v956 = vmul.f32 %v949, %v954
  %958 = vrot.lane.b32.xlu0 %v956, 32
  %v959 = vpop.permute.xlu0 %958
  %v961 = vadd.f32 %v951, %v959
  %v962 = vtanh.pop %v961
  %964 = vrot.lane.b32.xlu0 %v962, 64
  %v965 = vpop.permute.xlu0 %964
  %v967 = vmul.f32 %v949, %v965
  %v968 = vld [vmem:[%s2 + $0x38] sm:$0xff]
  %v969 = vld [vmem:[%s2 + $0x40] sm:$0xff]
  %v970 = vld [vmem:[%s2 + $0x48] sm:$0xff]
  %v971 = vld [vmem:[%s2 + $0x50] sm:$0xff]
  %v972 = vld [vmem:[%s2 + $0x58] sm:$0x1]
  %v973 = vlaneseq
  %v974 = vshrl.u32 %v973, 7
  %v975 = vsub.s32 0, %v974
  %v976 = vrot.slane %v972, %v975
  %978 = vrot.lane.b32.xlu0 %v967, 32
  %v979 = vpop.permute.xlu0 %978
  %v980 = vsel %vm165, %v979, 0
  %982 = vmatprep.subr.mxu0 0.0
  %983 = vmatpush1.msra.mxu0 %v968
  %984 = vmatprep.subr.mxu0 0.0
  %985 = vmatpush1.msra.mxu0 %v969
  %986 = vmatprep.subr.mxu0 0.0
  %987 = vmatpush1.msra.mxu0 %v970
  %988 = vmatprep.subr.mxu0 0.0
  %989 = vmatpush1.msra.mxu0 %v971
  %990 = vmatprep.subr.mxu0 0.0
  %991 = vmatpush1.msra.mxu0 0.0
  %992 = vmatprep.subr.mxu0 0.0
  %993 = vmatpush1.msra.mxu0 0.0
  %994 = vmatprep.subr.mxu0 0.0
  %995 = vmatpush1.msra.mxu0 0.0
  %996 = vmatprep.subr.mxu0 0.0
  %997 = vmatpush1.msra.mxu0 0.0
  %998 = vmatprep.subr.mxu0 0.0
  %999 = vmatpush1.msra.mxu0 0.0
  %1000 = vmatprep.subr.mxu0 0.0
  %1001 = vmatpush1.msra.mxu0 0.0
  %1002 = vmatprep.subr.mxu0 0.0
  %1003 = vmatpush1.msra.mxu0 0.0
  %1004 = vmatprep.subr.mxu0 0.0
  %1005 = vmatpush1.msra.mxu0 0.0
  %1006 = vmatprep.subr.mxu0 0.0
  %1007 = vmatpush1.msra.mxu0 0.0
  %1008 = vmatprep.subr.mxu0 0.0
  %1009 = vmatpush1.msra.mxu0 0.0
  %1010 = vmatprep.subr.mxu0 0.0
  %1011 = vmatpush1.msra.mxu0 0.0
  %1012 = vmatprep.subr.mxu0 0.0
  %1013 = vmatpush1.msra.mxu0 0.0
  %1014 = vmatprep.subr.mxu0 0.0
  %1015 = vmatpush1.msra.mxu0 0.0
  %1016 = vmatprep.subr.mxu0 0.0
  %1017 = vmatpush1.msra.mxu0 0.0
  %1018 = vmatprep.subr.mxu0 0.0
  %1019 = vmatpush1.msra.mxu0 0.0
  %1020 = vmatprep.subr.mxu0 0.0
  %1021 = vmatpush1.msra.mxu0 0.0
  %1022 = vmatprep.subr.mxu0 0.0
  %1023 = vmatpush1.msra.mxu0 0.0
  %1024 = vmatprep.subr.mxu0 0.0
  %1025 = vmatpush1.msra.mxu0 0.0
  %1026 = vmatprep.subr.mxu0 0.0
  %1027 = vmatpush1.msra.mxu0 0.0
  %1028 = vmatprep.subr.mxu0 0.0
  %1029 = vmatpush1.msra.mxu0 0.0
  %1030 = vmatprep.subr.mxu0 0.0
  %1031 = vmatpush1.msra.mxu0 0.0
  %1032 = vmatprep.subr.mxu0 0.0
  %1033 = vmatpush1.msra.mxu0 0.0
  %1034 = vmatprep.subr.mxu0 0.0
  %1035 = vmatpush1.msra.mxu0 0.0
  %1036 = vmatprep.subr.mxu0 0.0
  %1037 = vmatpush1.msra.mxu0 0.0
  %1038 = vmatprep.subr.mxu0 0.0
  %1039 = vmatpush1.msra.mxu0 0.0
  %1040 = vmatprep.subr.mxu0 0.0
  %1041 = vmatpush1.msra.mxu0 0.0
  %1042 = vmatprep.subr.mxu0 0.0
  %1043 = vmatpush1.msra.mxu0 0.0
  %1044 = vmatprep.subr.mxu0 0.0
  %1045 = vmatpush1.msra.mxu0 0.0
  %1046 = vmatprep.mubr.f32.mxu0 0.0
  %1047 = vmatmul.mubr.f32.gmra.mrb[0].mxu0 %v980
  %v1048 = vpop.f32.mrb[0].mxu0
  %v1049 = vadd.f32 %v976, %v1048
  %v1050 = vpop.f32.mrb[0].mxu0
  %1051 = vdwg.mxu0
  %1052 = vmax.xlane.f32.xlu0 %v1049
  %v1053 = vpop.xlane.xlu0 %1052
  %v1054 = vsub.f32 %v1049, %v1053
  %v1055 = vmul.f32 %v1054, 1.442695
  %v1056 = vpow.pop %v1055
  %1057 = vadd.xlane.f32.xlu0 %v1056
  %v1058 = vpop.xlane.xlu0 %1057
  %v1059 = vlog2.pop %v1058
  %v1060 = vmul.f32 %v1059, 0.6931472
  %v1061 = vsub.f32 %v1054, %v1060
  %1062 = vst [vmem:[%s3] sm:$0xff] %v1061
  // Predicated region
  $region14: #{rnn_forward.1} parent=0 // pred_check
    _
  $region15: #{rnn_forward.1} parent=0 // pred_check_branch
    %1064 = sbr.rel (0) target = $region17
  $region16: #{rnn_forward.1} parent=0 // pred_region
    _
  $region17: #{rnn_forward.1} parent=0 // pred_fallthru
    _
  // Predicated region
  $region18: #{rnn_forward.1} parent=0 // pred_check
    _
  $region19: #{rnn_forward.1} parent=0 // pred_check_branch
    %1066 = sbr.rel (0) target = $region21
  $region20: #{rnn_forward.1} parent=0 // pred_region
    _
  $region21: #{rnn_forward.1} parent=0 // pred_fallthru
    _

</llo_original>
